<compile_context>
chip_gen: v7x
topology: tpu7x:2x2x1
jax: 0.10.0
libtpu: 0.0.40
codegen_flags: <defaults>
</compile_context>

<pallas_src>
import functools

import numpy as np
import jax
import jax.numpy as jnp
from jax import lax
from jax.experimental import pallas as pl
from jax.experimental.pallas import tpu as pltpu


def _resnetv2_basic_kernel(x_ref, p_ref, bw2_ref, bw3_ref, o_ref, *, R, H, WC):
    """One row-block per grid step, lane-dense (rows, W*C) layout.

    x_ref   : (R, WC)      stacked input rows (R = images_per_block * H)
    p_ref   : (8, WC)      packed per-channel params: row0=s1, row1=b1, row2=b2
    bw2/bw3 : (K*WC, WC)   banded im2col conv weights (bf16), bn2 scale folded in bw2
    o_ref   : (R, WC)
    """
    x = x_ref[...]                                                  # (R, WC) f32
    s1 = p_ref[0:1, :]
    b1 = p_ref[1:2, :]
    b2 = p_ref[2:3, :]

    # pre-activation BN + ReLU (VPU). Identity shortcut is taken AFTER this,
    # exactly as in the PyTorch module.
    pre = jnp.maximum(x * s1 + b1, 0.0)                             # (R, WC)

    # Per-image row index so vertical shifts never leak across stacked images.
    rows = lax.broadcasted_iota(jnp.int32, (R, WC), 0)
    if H & (H - 1) == 0:
        row_in_img = rows & (H - 1)
    else:
        row_in_img = rows % H
    up_mask = row_in_img >= 1          # valid "row h-1" tap
    dn_mask = row_in_img <= H - 2      # valid "row h+1" tap

    zero_row = jnp.zeros((1, WC), pre.dtype)
    lhs_dtype = bw2_ref.dtype          # bf16 LHS -> native MXU path, f32 accumulation

    def row_taps(t):
        # Rows shifted by kh-1 (kh = 0,1,2) with zero borders at image boundaries.
        up = jnp.where(up_mask, jnp.concatenate([zero_row, t[:-1, :]], axis=0), 0.0)
        dn = jnp.where(dn_mask, jnp.concatenate([t[1:, :], zero_row], axis=0), 0.0)
        return jnp.concatenate([up, t, dn], axis=-1).astype(lhs_dtype)   # (R, K*WC)

    # conv2 (3x3, same, no bias) with bn2 scale folded into the weight columns,
    # then bn2 bias + ReLU -- single MXU matmul + VPU epilogue.
    acc = jnp.dot(row_taps(pre), bw2_ref[...], preferred_element_type=jnp.float32)
    y = jnp.maximum(acc + b2, 0.0)                                   # (R, WC)

    # conv3 (3x3, same, no bias) + residual add -- single MXU matmul.
    acc2 = jnp.dot(row_taps(y), bw3_ref[...], preferred_element_type=jnp.float32)

    o_ref[...] = (acc2 + pre).astype(o_ref.dtype)                    # lane-dense store


def conv_band_matrix(w_hwio, W):
    """Fold a KxK stride-1 'same' conv over width W into one (K*W*C, W*O) matmul.

    Row block kh, row (wi*C + c), column (wo*O + o) holds w_hwio[kh, kw, c, o] with
    kw = wi - wo + K//2 when valid, else 0 (implements zero padding along W).
    """
    K, _, C, O = w_hwio.shape
    P = K // 2
    wi = np.arange(W)[None, :, None]
    wo = np.arange(W)[None, None, :]
    kw = np.arange(K)[:, None, None]
    sel = (wi == wo + kw - P).astype(np.float32)                 # (K, W, W), static 0/1
    band = jnp.einsum('kxy,hkco->hxcyo', jnp.asarray(sel, dtype=w_hwio.dtype), w_hwio)
    return band.reshape(K * W * C, W * O)


def resnetv2_block_pallas(x_nhwc, s1, b1, w2_hwio, s2, b2, w3_hwio,
                          *, row_blocks=1, weight_dtype=jnp.bfloat16):
    N, H, W, C = x_nhwc.shape
    K = w2_hwio.shape[0]
    WC = W * C
    KWC = K * WC
    NH = N * H
    assert NH % row_blocks == 0
    R = NH // row_blocks
    assert R % H == 0, "each row block must hold whole images"

    # Fold channels into the lane axis and batch into the sublane (M) axis.
    x_f = x_nhwc.reshape(NH, WC)

    # Folded BN params, tiled across W to match the lane layout; packed into a single
    # sublane-aligned (8, WC) tile: row0=s1, row1=b1, row2=b2 (bn2 scale goes into bw2).
    s1f = jnp.tile(s1, W)
    b1f = jnp.tile(b1, W)
    s2f = jnp.tile(s2, W)
    b2f = jnp.tile(b2, W)
    params = jnp.stack([s1f, b1f, b2f], axis=0)
    params = jnp.pad(params, ((0, 8 - params.shape[0]), (0, 0)))     # (8, WC)

    # One-time weight preprocessing (analogous to BN folding): banded im2col weights,
    # bn2 scale folded into conv2 columns, cast to bf16 (halves weight DMA + VMEM).
    bw2 = (conv_band_matrix(w2_hwio, W) * s2f[None, :]).astype(weight_dtype)
    bw3 = conv_band_matrix(w3_hwio, W).astype(weight_dtype)

    kernel = functools.partial(_resnetv2_basic_kernel, R=R, H=H, WC=WC)

    out_f = pl.pallas_call(
        kernel,
        out_shape=jax.ShapeDtypeStruct((NH, WC), x_nhwc.dtype),
        grid_spec=pltpu.PrefetchScalarGridSpec(
            num_scalar_prefetch=0,
            grid=(row_blocks,),
            in_specs=[
                pl.BlockSpec((R, WC), lambda i: (i, 0)),        # stacked activations
                pl.BlockSpec((8, WC), lambda i: (0, 0)),        # packed s1/b1/b2
                pl.BlockSpec((KWC, WC), lambda i: (0, 0)),      # banded conv2 weight
                pl.BlockSpec((KWC, WC), lambda i: (0, 0)),      # banded conv3 weight
            ],
            out_specs=pl.BlockSpec((R, WC), lambda i: (i, 0)),
        ),
        compiler_params=pltpu.CompilerParams(
            dimension_semantics=("parallel",),   # row blocks are independent
        ),
    )(x_f, params, bw2, bw3)

    return out_f.reshape(N, H, W, C)


def resnetv2_block_reference(x_nhwc, s1, b1, w2, s2, b2, w3):
    """Pure-JAX f32 reference (eval-mode BN folded into scale/bias)."""
    pre = jnp.maximum(x_nhwc * s1 + b1, 0.0)
    shortcut = pre
    y = lax.conv_general_dilated(pre, w2, (1, 1), 'SAME',
                                 dimension_numbers=('NHWC', 'HWIO', 'NHWC'))
    y = jnp.maximum(y * s2 + b2, 0.0)
    y = lax.conv_general_dilated(y, w3, (1, 1), 'SAME',
                                 dimension_numbers=('NHWC', 'HWIO', 'NHWC'))
    return y + shortcut


def fold_bn(gamma, beta, mean, var, eps=1e-5):
    scale = gamma / jnp.sqrt(var + eps)
    bias = beta - mean * scale
    return scale, bias


if __name__ == "__main__":
    # Module config: ResNetV2Block(in_filters=8, out_filters=8, kernel_size=3,
    #                              stride=1, dilation=1, conv_shortcut=False,
    #                              block_type='basic')
    N, C, H, W = 2, 8, 16, 16
    K = 3

    key = jax.random.PRNGKey(0)
    keys = jax.random.split(key, 12)

    # input (PyTorch would be NCHW) -> transpose to NHWC for the kernel
    x_nchw = jax.random.normal(keys[0], (N, C, H, W), jnp.float32)
    x_nhwc = jnp.transpose(x_nchw, (0, 2, 3, 1))

    # preact_bn (BatchNorm2d(in_filters)) params + running stats
    g1 = 1.0 + 0.1 * jax.random.normal(keys[1], (C,), jnp.float32)
    be1 = 0.1 * jax.random.normal(keys[2], (C,), jnp.float32)
    m1 = 0.1 * jax.random.normal(keys[3], (C,), jnp.float32)
    v1 = jnp.abs(jax.random.normal(keys[4], (C,), jnp.float32)) + 0.5

    # conv2: Conv2d(C, C, 3, stride=1, bias=False) -> weights in HWIO
    w2 = 0.1 * jax.random.normal(keys[5], (K, K, C, C), jnp.float32)

    # bn2 params + running stats
    g2 = 1.0 + 0.1 * jax.random.normal(keys[6], (C,), jnp.float32)
    be2 = 0.1 * jax.random.normal(keys[7], (C,), jnp.float32)
    m2 = 0.1 * jax.random.normal(keys[8], (C,), jnp.float32)
    v2 = jnp.abs(jax.random.normal(keys[9], (C,), jnp.float32)) + 0.5

    # conv3: Conv2d(C, C, 3, stride=1, bias=False) -> HWIO
    w3 = 0.1 * jax.random.normal(keys[10], (K, K, C, C), jnp.float32)

    s1, b1 = fold_bn(g1, be1, m1, v1)
    s2, b2 = fold_bn(g2, be2, m2, v2)

    out = resnetv2_block_pallas(x_nhwc, s1, b1, w2, s2, b2, w3)
    out = jax.block_until_ready(out)

    ref = resnetv2_block_reference(x_nhwc, s1, b1, w2, s2, b2, w3)
    ref = jax.block_until_ready(ref)

    assert out.shape == (N, H, W, C)
    # Tolerance relaxed vs the pure-f32 version because conv weights + matmul LHS are
    # bf16 (f32 accumulation); observed error is well inside this bound.
    assert jnp.allclose(out, ref, atol=3e-2, rtol=3e-2), (
        float(jnp.max(jnp.abs(out - ref))))

    print("KERNEL_OK")
</pallas_src>

<mosaic_0001>
module attributes {stable_mosaic.version = 11 : i64} {
  func.func @_resnetv2_basic_kernel(%arg0: i32, %arg1: memref<32x128xf32, #tpu.memory_space<vmem>>, %arg2: memref<8x128xf32, #tpu.memory_space<vmem>>, %arg3: memref<384x128xbf16, #tpu.memory_space<vmem>>, %arg4: memref<384x128xbf16, #tpu.memory_space<vmem>>, %arg5: memref<32x128xf32, #tpu.memory_space<vmem>>) attributes {dimension_semantics = [#tpu.dimension_semantics<parallel>], iteration_bounds = array<i64: 1>, scalar_prefetch = 0 : i64, scratch_operands = 0 : i64, tpu.core_type = #tpu.core_type<tc>, window_params = [{transform_indices = @transform_0, window_bounds = array<i64: 32, 128>}, {pipeline_mode = #tpu.pipeline_mode<synchronous>, transform_indices = @transform_1, window_bounds = array<i64: 8, 128>}, {pipeline_mode = #tpu.pipeline_mode<synchronous>, transform_indices = @transform_2, window_bounds = array<i64: 384, 128>}, {pipeline_mode = #tpu.pipeline_mode<synchronous>, transform_indices = @transform_3, window_bounds = array<i64: 384, 128>}, {transform_indices = @transform_4, window_bounds = array<i64: 32, 128>}]} {
    %c0 = arith.constant 0 : index
    %c0_0 = arith.constant 0 : index
    %0 = vector.load %arg1[%c0, %c0_0] : memref<32x128xf32, #tpu.memory_space<vmem>>, vector<32x128xf32>
    %c0_1 = arith.constant 0 : index
    %c0_2 = arith.constant 0 : index
    %1 = vector.load %arg2[%c0_1, %c0_2] : memref<8x128xf32, #tpu.memory_space<vmem>>, vector<1x128xf32>
    %c1 = arith.constant 1 : index
    %c0_3 = arith.constant 0 : index
    %2 = vector.load %arg2[%c1, %c0_3] : memref<8x128xf32, #tpu.memory_space<vmem>>, vector<1x128xf32>
    %c2 = arith.constant 2 : index
    %c0_4 = arith.constant 0 : index
    %3 = vector.load %arg2[%c2, %c0_4] : memref<8x128xf32, #tpu.memory_space<vmem>>, vector<1x128xf32>
    %4 = vector.broadcast %1 : vector<1x128xf32> to vector<32x128xf32>
    %5 = arith.mulf %0, %4 : vector<32x128xf32>
    %6 = vector.broadcast %2 : vector<1x128xf32> to vector<32x128xf32>
    %7 = arith.addf %5, %6 : vector<32x128xf32>
    %cst = arith.constant 0.000000e+00 : f32
    %8 = vector.broadcast %cst : f32 to vector<32x128xf32>
    %9 = arith.maximumf %7, %8 : vector<32x128xf32>
    %10 = tpu.iota {dimensions = array<i32: 0>} : vector<32x128xi32>
    %c15_i32 = arith.constant 15 : i32
    %11 = vector.broadcast %c15_i32 : i32 to vector<32x128xi32>
    %12 = arith.andi %10, %11 : vector<32x128xi32>
    %c1_i32 = arith.constant 1 : i32
    %13 = vector.broadcast %c1_i32 : i32 to vector<32x128xi32>
    %14 = arith.cmpi sge, %12, %13 : vector<32x128xi32>
    %c14_i32 = arith.constant 14 : i32
    %15 = vector.broadcast %c14_i32 : i32 to vector<32x128xi32>
    %16 = arith.cmpi sle, %12, %15 : vector<32x128xi32>
    %cst_5 = arith.constant 0.000000e+00 : f32
    %17 = vector.broadcast %cst_5 : f32 to vector<1x128xf32>
    %18 = vector.extract_strided_slice %9 {offsets = [0, 0], sizes = [31, 128], strides = [1, 1]} : vector<32x128xf32> to vector<31x128xf32>
    %19 = tpu.concatenate %17, %18 in 0 : vector<1x128xf32>, vector<31x128xf32> -> vector<32x128xf32>
    %cst_6 = arith.constant 0.000000e+00 : f32
    %20 = vector.broadcast %cst_6 : f32 to vector<32x128xf32>
    %21 = arith.select %14, %19, %20 : vector<32x128xi1>, vector<32x128xf32>
    %22 = vector.extract_strided_slice %9 {offsets = [1, 0], sizes = [31, 128], strides = [1, 1]} : vector<32x128xf32> to vector<31x128xf32>
    %23 = tpu.concatenate %22, %17 in 0 : vector<31x128xf32>, vector<1x128xf32> -> vector<32x128xf32>
    %cst_7 = arith.constant 0.000000e+00 : f32
    %24 = vector.broadcast %cst_7 : f32 to vector<32x128xf32>
    %25 = arith.select %16, %23, %24 : vector<32x128xi1>, vector<32x128xf32>
    %26 = tpu.concatenate %21, %9, %25 in 1 : vector<32x128xf32>, vector<32x128xf32>, vector<32x128xf32> -> vector<32x384xf32>
    %27 = arith.truncf %26 : vector<32x384xf32> to vector<32x384xbf16>
    %c0_8 = arith.constant 0 : index
    %c0_9 = arith.constant 0 : index
    %28 = vector.load %arg3[%c0_8, %c0_9] : memref<384x128xbf16, #tpu.memory_space<vmem>>, vector<384x128xbf16>
    %cst_10 = arith.constant dense<0.000000e+00> : vector<32x128xf32>
    %29 = tpu.matmul %27, %28, %cst_10 {dimension_numbers = #tpu.dot_dimension_numbers<[1], [0], [0], [1], [0, 0, 1, 1], [], []>} : vector<32x384xbf16>, vector<384x128xbf16>, vector<32x128xf32> -> vector<32x128xf32>
    %30 = vector.broadcast %3 : vector<1x128xf32> to vector<32x128xf32>
    %31 = arith.addf %29, %30 : vector<32x128xf32>
    %cst_11 = arith.constant 0.000000e+00 : f32
    %32 = vector.broadcast %cst_11 : f32 to vector<32x128xf32>
    %33 = arith.maximumf %31, %32 : vector<32x128xf32>
    %34 = vector.extract_strided_slice %33 {offsets = [0, 0], sizes = [31, 128], strides = [1, 1]} : vector<32x128xf32> to vector<31x128xf32>
    %35 = tpu.concatenate %17, %34 in 0 : vector<1x128xf32>, vector<31x128xf32> -> vector<32x128xf32>
    %cst_12 = arith.constant 0.000000e+00 : f32
    %36 = vector.broadcast %cst_12 : f32 to vector<32x128xf32>
    %37 = arith.select %14, %35, %36 : vector<32x128xi1>, vector<32x128xf32>
    %38 = vector.extract_strided_slice %33 {offsets = [1, 0], sizes = [31, 128], strides = [1, 1]} : vector<32x128xf32> to vector<31x128xf32>
    %39 = tpu.concatenate %38, %17 in 0 : vector<31x128xf32>, vector<1x128xf32> -> vector<32x128xf32>
    %cst_13 = arith.constant 0.000000e+00 : f32
    %40 = vector.broadcast %cst_13 : f32 to vector<32x128xf32>
    %41 = arith.select %16, %39, %40 : vector<32x128xi1>, vector<32x128xf32>
    %42 = tpu.concatenate %37, %33, %41 in 1 : vector<32x128xf32>, vector<32x128xf32>, vector<32x128xf32> -> vector<32x384xf32>
    %43 = arith.truncf %42 : vector<32x384xf32> to vector<32x384xbf16>
    %c0_14 = arith.constant 0 : index
    %c0_15 = arith.constant 0 : index
    %44 = vector.load %arg4[%c0_14, %c0_15] : memref<384x128xbf16, #tpu.memory_space<vmem>>, vector<384x128xbf16>
    %cst_16 = arith.constant dense<0.000000e+00> : vector<32x128xf32>
    %45 = tpu.matmul %43, %44, %cst_16 {dimension_numbers = #tpu.dot_dimension_numbers<[1], [0], [0], [1], [0, 0, 1, 1], [], []>} : vector<32x384xbf16>, vector<384x128xbf16>, vector<32x128xf32> -> vector<32x128xf32>
    %46 = arith.addf %45, %9 : vector<32x128xf32>
    %c0_17 = arith.constant 0 : index
    %c0_18 = arith.constant 0 : index
    %47 = vector.load %arg5[%c0_17, %c0_18] : memref<32x128xf32, #tpu.memory_space<vmem>>, vector<32x128xf32>
    tpu.vector_store %arg5[%c0_17, %c0_18], %46 {strides = array<i32>} : memref<32x128xf32, #tpu.memory_space<vmem>>, vector<32x128xf32>,
    return
  }
  func.func @transform_0(%arg0: i32) -> (i32, i32) {
    %c0_i32 = arith.constant 0 : i32
    %c0_i32_0 = arith.constant 0 : i32
    return %arg0, %c0_i32 : i32, i32
  }
  func.func @transform_1(%arg0: i32) -> (i32, i32) {
    %c0_i32 = arith.constant 0 : i32
    %c0_i32_0 = arith.constant 0 : i32
    %c0_i32_1 = arith.constant 0 : i32
    return %c0_i32, %c0_i32_0 : i32, i32
  }
  func.func @transform_2(%arg0: i32) -> (i32, i32) {
    %c0_i32 = arith.constant 0 : i32
    %c0_i32_0 = arith.constant 0 : i32
    %c0_i32_1 = arith.constant 0 : i32
    return %c0_i32, %c0_i32_0 : i32, i32
  }
  func.func @transform_3(%arg0: i32) -> (i32, i32) {
    %c0_i32 = arith.constant 0 : i32
    %c0_i32_0 = arith.constant 0 : i32
    %c0_i32_1 = arith.constant 0 : i32
    return %c0_i32, %c0_i32_0 : i32, i32
  }
  func.func @transform_4(%arg0: i32) -> (i32, i32) {
    %c0_i32 = arith.constant 0 : i32
    %c0_i32_0 = arith.constant 0 : i32
    return %arg0, %c0_i32 : i32, i32
  }
}

</mosaic_0001>

<llo_original>
// kernel: tpu_custom_call.1
$region0: #{tpu_custom_call.1}
  #allocation0 [shape = 'u32[]', space=smem, size = 0x4, offset = 0x4, fixed_abs, tag = 'smem constant byte address 0x4 - core index']
  #allocation1 [shape = 'u32[144,128]{1,0:T(1,128)}', space=vmem, size = 0x12000, scoped, tag = 'internal scratch']
  %s0 = inlined_call_operand.hbm [shape: f32[32,128], index: 0, kind: input, shape index: {}]
  %s1 = inlined_call_operand.hbm [shape: f32[8,128], index: 1, kind: input, shape index: {}]
  %s2 = inlined_call_operand.hbm [shape: bf16[384,128], index: 2, kind: input, shape index: {}]
  %s3 = inlined_call_operand.hbm [shape: bf16[384,128], index: 3, kind: input, shape index: {}]
  %s4 = inlined_call_operand.hbm [shape: f32[32,128], index: 4, kind: output, shape index: {}]
  %s5 = sld [smem:[#allocation0]]
  $region42: #{tpu_custom_call.1} parent=0
    _
  %s7 = ssub.s32 1, %s5
  %s8 = scalar_select 0, %s7, %s5
  $region1: #{tpu_custom_call.1} parent=0
    #allocation2 [shape = 'u8[16384]{0}', space=vmem, size = 0x4000, scoped, tag = 'input window, operand 0, single buffered']
    #allocation3 [shape = 's32[1]{0}', space=sflag, size = 0x4, scoped, tag = 'scoped memory for tpu_custom_call.1']
    #allocation4 [shape = 's32[1]{0}', space=sflag, size = 0x4, scoped, tag = 'scoped memory for tpu_custom_call.1']
    #allocation5 [shape = 'u8[4096]{0}', space=vmem, size = 0x1000, scoped, tag = 'input window, operand 1, single buffered']
    #allocation6 [shape = 's32[1]{0}', space=sflag, size = 0x4, scoped, tag = 'scoped memory for tpu_custom_call.1']
    #allocation7 [shape = 'u8[98304]{0}', space=vmem, size = 0x18000, scoped, tag = 'input window, operand 2, single buffered']
    #allocation8 [shape = 'u8[98304]{0}', space=vmem, size = 0x18000, scoped, tag = 'input window, operand 3, single buffered']
    #allocation9 [shape = 's32[1]{0}', space=sflag, size = 0x4, scoped, tag = 'scoped memory for tpu_custom_call.1']
    #allocation10 [shape = 'u8[16384]{0}', space=vmem, size = 0x4000, scoped, tag = 'output window, operand 0, single buffered']
    %9 = vsyncpa [#allocation3], 0
    %10 = vsyncpa [#allocation6], 0
    %11 = vsyncpa [#allocation9], 0
    %12 = vsyncpa [#allocation4], 0
    // Predicated region
    $region2: #{tpu_custom_call.1} parent=1 // pred_check
      _
    $region3: #{tpu_custom_call.1} parent=1 // pred_check_branch
      %14 = sbr.rel (0) target = $region5
    $region4: #{tpu_custom_call.1} parent=1 // pred_region
      %s16 = ssub.s32 512, 512
      %17 = vsyncadd [#allocation3], %s16
      %s18 = sshll.u32 [#allocation2], 4
      %s19 = int_to_ptr.vmem [resolvable:$true] %s18
      %24 = dma.hbm_to_vmem [thread:$0]  %s0, 512, %s19, [#allocation3], 128, 128, 8
    $region5: #{tpu_custom_call.1} parent=1 // pred_fallthru
      _
    // Predicated region
    $region6: #{tpu_custom_call.1} parent=1 // pred_check
      _
    $region7: #{tpu_custom_call.1} parent=1 // pred_check_branch
      %26 = sbr.rel (0) target = $region9
    $region8: #{tpu_custom_call.1} parent=1 // pred_region
      %s28 = ssub.s32 128, 128
      %29 = vsyncadd [#allocation6], %s28
      %s31 = sshll.u32 [#allocation5], 4
      %s32 = int_to_ptr.vmem [resolvable:$true] %s31
      %34 = dma.hbm_to_vmem [thread:$0]  %s1, 128, %s32, [#allocation6]
    $region9: #{tpu_custom_call.1} parent=1 // pred_fallthru
      _
    // Predicated region
    $region10: #{tpu_custom_call.1} parent=1 // pred_check
      _
    $region11: #{tpu_custom_call.1} parent=1 // pred_check_branch
      %36 = sbr.rel (0) target = $region13
    $region12: #{tpu_custom_call.1} parent=1 // pred_region
      %s38 = ssub.s32 3072, 3072
      %39 = vsyncadd [#allocation6], %s38
      %s40 = sshll.u32 [#allocation7], 4
      %s41 = int_to_ptr.vmem [resolvable:$true] %s40
      %46 = dma.hbm_to_vmem [thread:$0]  %s2, 3072, %s41, [#allocation6], 64, 64, 4
    $region13: #{tpu_custom_call.1} parent=1 // pred_fallthru
      _
    // Predicated region
    $region14: #{tpu_custom_call.1} parent=1 // pred_check
      _
    $region15: #{tpu_custom_call.1} parent=1 // pred_check_branch
      %48 = sbr.rel (0) target = $region17
    $region16: #{tpu_custom_call.1} parent=1 // pred_region
      %s50 = ssub.s32 3072, 3072
      %51 = vsyncadd [#allocation9], %s50
      %s52 = sshll.u32 [#allocation8], 4
      %s53 = int_to_ptr.vmem [resolvable:$true] %s52
      %58 = dma.hbm_to_vmem [thread:$0]  %s3, 3072, %s53, [#allocation9], 64, 64, 4
    $region17: #{tpu_custom_call.1} parent=1 // pred_fallthru
      _
    // Predicated region
    $region18: #{tpu_custom_call.1} parent=1 // pred_check
      _
    $region19: #{tpu_custom_call.1} parent=1 // pred_check_branch
      %60 = sbr.rel (0) target = $region21
    $region20: #{tpu_custom_call.1} parent=1 // pred_region
      %61 = dma.done [#allocation3], 512
    $region21: #{tpu_custom_call.1} parent=1 // pred_fallthru
      _
    // Predicated region
    $region22: #{tpu_custom_call.1} parent=1 // pred_check
      _
    $region23: #{tpu_custom_call.1} parent=1 // pred_check_branch
      %63 = sbr.rel (0) target = $region25
    $region24: #{tpu_custom_call.1} parent=1 // pred_region
      %64 = dma.done [#allocation6], 128
    $region25: #{tpu_custom_call.1} parent=1 // pred_fallthru
      _
    // Predicated region
    $region26: #{tpu_custom_call.1} parent=1 // pred_check
      _
    $region27: #{tpu_custom_call.1} parent=1 // pred_check_branch
      %66 = sbr.rel (0) target = $region29
    $region28: #{tpu_custom_call.1} parent=1 // pred_region
      %67 = dma.done [#allocation6], 3072
    $region29: #{tpu_custom_call.1} parent=1 // pred_fallthru
      _
    // Predicated region
    $region30: #{tpu_custom_call.1} parent=1 // pred_check
      _
    $region31: #{tpu_custom_call.1} parent=1 // pred_check_branch
      %69 = sbr.rel (0) target = $region33
    $region32: #{tpu_custom_call.1} parent=1 // pred_region
      %70 = dma.done [#allocation9], 3072
    $region33: #{tpu_custom_call.1} parent=1 // pred_fallthru
      _
    %v72 = vld [vmem:[#allocation2] sm:$0xff]
    %v73 = vld [vmem:[#allocation2 + $0x8] sm:$0xff]
    %v74 = vld [vmem:[#allocation2 + $0x10] sm:$0xff]
    %v75 = vld [vmem:[#allocation2 + $0x18] sm:$0xff]
    %v76 = vld [vmem:[#allocation5] sm:$0x1]
    %v77 = vld [vmem:[#allocation5 + $0x1] sm:$0x1]
    %v78 = vld [vmem:[#allocation5 + $0x2] sm:$0x1]
    %v79 = vlaneseq
    %v80 = vshrl.u32 %v79, 7
    %v81 = vsub.s32 0, %v80
    %v82 = vrot.slane %v76, %v81
    %v83 = vmul.f32 %v72, %v82
    %v84 = vmul.f32 %v73, %v82
    %v85 = vmul.f32 %v74, %v82
    %v86 = vmul.f32 %v75, %v82
    %v87 = vlaneseq
    %v88 = vshrl.u32 %v87, 7
    %v89 = vsub.s32 0, %v88
    %v90 = vrot.slane %v77, %v89
    %v91 = vadd.f32 %v83, %v90
    %v92 = vadd.f32 %v84, %v90
    %v93 = vadd.f32 %v85, %v90
    %v94 = vadd.f32 %v86, %v90
    %v95 = vmax.f32 %v91, 0.0
    %v96 = vmax.f32 %v92, 0.0
    %v97 = vmax.f32 %v93, 0.0
    %v98 = vmax.f32 %v94, 0.0
    %v99 = vlaneseq
    %v100 = vshrl.u32 %v99, 7
    %v101 = vadd.s32 %v100, 8
    %v102 = vadd.s32 %v100, 16
    %v103 = vadd.s32 %v100, 24
    %v104 = vand.u32 %v100, 15
    %v105 = vand.u32 %v101, 15
    %v106 = vand.u32 %v102, 15
    %v107 = vand.u32 %v103, 15
    %vm108 = vcmp.ge.s32.totalorder %v104, 1
    %vm109 = vcmp.ge.s32.totalorder %v105, 1
    %vm110 = vcmp.ge.s32.totalorder %v106, 1
    %vm111 = vcmp.ge.s32.totalorder %v107, 1
    %vm112 = vcmp.le.s32.totalorder %v104, 14
    %vm113 = vcmp.le.s32.totalorder %v105, 14
    %vm114 = vcmp.le.s32.totalorder %v106, 14
    %vm115 = vcmp.le.s32.totalorder %v107, 14
    %vm120 = vcmask 1040384
    %v121 = vrot.slane %v95, 7
    %v122 = vrot.slane %v96, 7
    %v123 = vsel %vm120, %v121, %v122
    %v124 = vrot.slane %v97, 7
    %v125 = vsel %vm120, %v122, %v124
    %v126 = vrot.slane %v98, 7
    %v127 = vsel %vm120, %v124, %v126
    %v132 = vsel %vm120, 0.0, %v121
    %v133 = vsel %vm108, %v132, 0.0
    %v134 = vsel %vm109, %v123, 0.0
    %v135 = vsel %vm110, %v125, 0.0
    %v136 = vsel %vm111, %v127, 0.0
    %vm137 = vcmask 1046528
    %v138 = vrot.slane %v95, 1
    %v139 = vrot.slane %v96, 1
    %v140 = vsel %vm137, %v138, %v139
    %v141 = vrot.slane %v97, 1
    %v142 = vsel %vm137, %v139, %v141
    %v143 = vrot.slane %v98, 1
    %v144 = vsel %vm137, %v141, %v143
    %v149 = vsel %vm137, %v143, 0.0
    %v150 = vsel %vm112, %v140, 0.0
    %v151 = vsel %vm113, %v142, 0.0
    %v152 = vsel %vm114, %v144, 0.0
    %v153 = vsel %vm115, %v149, 0.0
    %v154 = vpack.c.bf16 %v134, %v133
    %v155 = vpack.c.bf16 %v96, %v95
    %v156 = vpack.c.bf16 %v151, %v150
    %v157 = vpack.c.bf16 %v136, %v135
    %v158 = vpack.c.bf16 %v98, %v97
    %v159 = vpack.c.bf16 %v153, %v152
    %v160 = vld [vmem:[#allocation7] sm:$0xf]
    %v161 = vld [vmem:[#allocation7 + $0x4] sm:$0xf]
    %v162 = vld [vmem:[#allocation7 + $0x8] sm:$0xf]
    %v163 = vld [vmem:[#allocation7 + $0xc] sm:$0xf]
    %v164 = vld [vmem:[#allocation7 + $0x10] sm:$0xf]
    %v165 = vld [vmem:[#allocation7 + $0x14] sm:$0xf]
    %v166 = vld [vmem:[#allocation7 + $0x18] sm:$0xf]
    %v167 = vld [vmem:[#allocation7 + $0x1c] sm:$0xf]
    %v168 = vld [vmem:[#allocation7 + $0x20] sm:$0xf]
    %v169 = vld [vmem:[#allocation7 + $0x24] sm:$0xf]
    %v170 = vld [vmem:[#allocation7 + $0x28] sm:$0xf]
    %v171 = vld [vmem:[#allocation7 + $0x2c] sm:$0xf]
    %v172 = vld [vmem:[#allocation7 + $0x30] sm:$0xf]
    %v173 = vld [vmem:[#allocation7 + $0x34] sm:$0xf]
    %v174 = vld [vmem:[#allocation7 + $0x38] sm:$0xf]
    %v175 = vld [vmem:[#allocation7 + $0x3c] sm:$0xf]
    %v176 = vld [vmem:[#allocation7 + $0x40] sm:$0xf]
    %v177 = vld [vmem:[#allocation7 + $0x44] sm:$0xf]
    %v178 = vld [vmem:[#allocation7 + $0x48] sm:$0xf]
    %v179 = vld [vmem:[#allocation7 + $0x4c] sm:$0xf]
    %v180 = vld [vmem:[#allocation7 + $0x50] sm:$0xf]
    %v181 = vld [vmem:[#allocation7 + $0x54] sm:$0xf]
    %v182 = vld [vmem:[#allocation7 + $0x58] sm:$0xf]
    %v183 = vld [vmem:[#allocation7 + $0x5c] sm:$0xf]
    %v184 = vld [vmem:[#allocation7 + $0x60] sm:$0xf]
    %v185 = vld [vmem:[#allocation7 + $0x64] sm:$0xf]
    %v186 = vld [vmem:[#allocation7 + $0x68] sm:$0xf]
    %v187 = vld [vmem:[#allocation7 + $0x6c] sm:$0xf]
    %v188 = vld [vmem:[#allocation7 + $0x70] sm:$0xf]
    %v189 = vld [vmem:[#allocation7 + $0x74] sm:$0xf]
    %v190 = vld [vmem:[#allocation7 + $0x78] sm:$0xf]
    %v191 = vld [vmem:[#allocation7 + $0x7c] sm:$0xf]
    %v192 = vld [vmem:[#allocation7 + $0x80] sm:$0xf]
    %v193 = vld [vmem:[#allocation7 + $0x84] sm:$0xf]
    %v194 = vld [vmem:[#allocation7 + $0x88] sm:$0xf]
    %v195 = vld [vmem:[#allocation7 + $0x8c] sm:$0xf]
    %v196 = vld [vmem:[#allocation7 + $0x90] sm:$0xf]
    %v197 = vld [vmem:[#allocation7 + $0x94] sm:$0xf]
    %v198 = vld [vmem:[#allocation7 + $0x98] sm:$0xf]
    %v199 = vld [vmem:[#allocation7 + $0x9c] sm:$0xf]
    %v200 = vld [vmem:[#allocation7 + $0xa0] sm:$0xf]
    %v201 = vld [vmem:[#allocation7 + $0xa4] sm:$0xf]
    %v202 = vld [vmem:[#allocation7 + $0xa8] sm:$0xf]
    %v203 = vld [vmem:[#allocation7 + $0xac] sm:$0xf]
    %v204 = vld [vmem:[#allocation7 + $0xb0] sm:$0xf]
    %v205 = vld [vmem:[#allocation7 + $0xb4] sm:$0xf]
    %v206 = vld [vmem:[#allocation7 + $0xb8] sm:$0xf]
    %v207 = vld [vmem:[#allocation7 + $0xbc] sm:$0xf]
    %v208 = vlaneseq
    %v209 = vshrl.u32 %v208, 7
    %v210 = vsub.s32 0, %v209
    %v211 = vrot.slane %v78, %v210
    %v260 = vunpack.c.l.b16 %v160
    %v261 = vunpack.c.l.b16 %v161
    %v262 = vunpack.c.l.b16 %v162
    %v263 = vunpack.c.l.b16 %v163
    %v264 = vunpack.c.l.b16 %v164
    %v265 = vunpack.c.l.b16 %v165
    %v266 = vunpack.c.l.b16 %v166
    %v267 = vunpack.c.l.b16 %v167
    %v268 = vunpack.c.l.b16 %v168
    %v269 = vunpack.c.l.b16 %v169
    %v270 = vunpack.c.l.b16 %v170
    %v271 = vunpack.c.l.b16 %v171
    %v272 = vunpack.c.l.b16 %v172
    %v273 = vunpack.c.l.b16 %v173
    %v274 = vunpack.c.l.b16 %v174
    %v275 = vunpack.c.l.b16 %v175
    %v276 = vunpack.c.l.b16 %v176
    %v277 = vunpack.c.l.b16 %v177
    %v278 = vunpack.c.l.b16 %v178
    %v279 = vunpack.c.l.b16 %v179
    %v280 = vunpack.c.l.b16 %v180
    %v281 = vunpack.c.l.b16 %v181
    %v282 = vunpack.c.l.b16 %v182
    %v283 = vunpack.c.l.b16 %v183
    %v284 = vunpack.c.l.b16 %v184
    %v285 = vunpack.c.l.b16 %v185
    %v286 = vunpack.c.l.b16 %v186
    %v287 = vunpack.c.l.b16 %v187
    %v288 = vunpack.c.l.b16 %v188
    %v289 = vunpack.c.l.b16 %v189
    %v290 = vunpack.c.l.b16 %v190
    %v291 = vunpack.c.l.b16 %v191
    %v292 = vunpack.c.l.b16 %v192
    %v293 = vunpack.c.l.b16 %v193
    %v294 = vunpack.c.l.b16 %v194
    %v295 = vunpack.c.l.b16 %v195
    %v296 = vunpack.c.l.b16 %v196
    %v297 = vunpack.c.l.b16 %v197
    %v298 = vunpack.c.l.b16 %v198
    %v299 = vunpack.c.l.b16 %v199
    %v300 = vunpack.c.l.b16 %v200
    %v301 = vunpack.c.l.b16 %v201
    %v302 = vunpack.c.l.b16 %v202
    %v303 = vunpack.c.l.b16 %v203
    %v304 = vunpack.c.l.b16 %v204
    %v305 = vunpack.c.l.b16 %v205
    %v306 = vunpack.c.l.b16 %v206
    %v307 = vunpack.c.l.b16 %v207
    %v308 = vpack.c.b16 %v261, %v260
    %v309 = vpack.c.b16 %v263, %v262
    %v310 = vpack.c.b16 %v265, %v264
    %v311 = vpack.c.b16 %v267, %v266
    %v312 = vpack.c.b16 %v269, %v268
    %v313 = vpack.c.b16 %v271, %v270
    %v314 = vpack.c.b16 %v273, %v272
    %v315 = vpack.c.b16 %v275, %v274
    %v316 = vpack.c.b16 %v277, %v276
    %v317 = vpack.c.b16 %v279, %v278
    %v318 = vpack.c.b16 %v281, %v280
    %v319 = vpack.c.b16 %v283, %v282
    %v320 = vpack.c.b16 %v285, %v284
    %v321 = vpack.c.b16 %v287, %v286
    %v322 = vpack.c.b16 %v289, %v288
    %v323 = vpack.c.b16 %v291, %v290
    %v324 = vpack.c.b16 %v293, %v292
    %v325 = vpack.c.b16 %v295, %v294
    %v326 = vpack.c.b16 %v297, %v296
    %v327 = vpack.c.b16 %v299, %v298
    %v328 = vpack.c.b16 %v301, %v300
    %v329 = vpack.c.b16 %v303, %v302
    %v330 = vpack.c.b16 %v305, %v304
    %v331 = vpack.c.b16 %v307, %v306
    %356 = vmatprep.subr.bf16.mxu0 0
    %357 = vmatpush1.bf16.msra.mxu0 %v308
    %358 = vmatprep.subr.bf16.mxu0 0
    %359 = vmatpush1.bf16.msra.mxu0 %v309
    %360 = vmatprep.subr.bf16.mxu0 0
    %361 = vmatpush1.bf16.msra.mxu0 %v310
    %362 = vmatprep.subr.bf16.mxu0 0
    %363 = vmatpush1.bf16.msra.mxu0 %v311
    %364 = vmatprep.subr.bf16.mxu0 0
    %365 = vmatpush1.bf16.msra.mxu0 %v312
    %366 = vmatprep.subr.bf16.mxu0 0
    %367 = vmatpush1.bf16.msra.mxu0 %v313
    %368 = vmatprep.subr.bf16.mxu0 0
    %369 = vmatpush1.bf16.msra.mxu0 %v314
    %370 = vmatprep.subr.bf16.mxu0 0
    %371 = vmatpush1.bf16.msra.mxu0 %v315
    %372 = vmatprep.subr.bf16.mxu0 0
    %373 = vmatpush1.bf16.msra.mxu0 %v316
    %374 = vmatprep.subr.bf16.mxu0 0
    %375 = vmatpush1.bf16.msra.mxu0 %v317
    %376 = vmatprep.subr.bf16.mxu0 0
    %377 = vmatpush1.bf16.msra.mxu0 %v318
    %378 = vmatprep.subr.bf16.mxu0 0
    %379 = vmatpush1.bf16.msra.mxu0 %v319
    %380 = vmatprep.subr.bf16.mxu0 0
    %381 = vmatpush1.bf16.msra.mxu0 %v320
    %382 = vmatprep.subr.bf16.mxu0 0
    %383 = vmatpush1.bf16.msra.mxu0 %v321
    %384 = vmatprep.subr.bf16.mxu0 0
    %385 = vmatpush1.bf16.msra.mxu0 %v322
    %386 = vmatprep.subr.bf16.mxu0 0
    %387 = vmatpush1.bf16.msra.mxu0 %v323
    %388 = vmatprep.mubr.bf16.mxu0 %v155
    %389 = vmatmul.mubr.bf16.gmra.mrb[0].mxu0 %v154
    %v390 = vpop.f32.mrb[0].mxu0
    %v391 = vadd.f32 %v211, %v390
    %v392 = vpop.f32.mrb[0].mxu0
    %v393 = vpop.f32.mrb[0].mxu0
    %v394 = vadd.f32 %v211, %v393
    %v395 = vpop.f32.mrb[0].mxu0
    %396 = vmatprep.mubr.bf16.mxu0 %v158
    %397 = vmatmul.mubr.bf16.gmra.mrb[0].mxu0 %v157
    %v398 = vpop.f32.mrb[0].mxu0
    %v399 = vadd.f32 %v211, %v398
    %v400 = vpop.f32.mrb[0].mxu0
    %v401 = vpop.f32.mrb[0].mxu0
    %v402 = vadd.f32 %v211, %v401
    %v403 = vpop.f32.mrb[0].mxu0
    %404 = vdwg.mxu0
    %405 = vmatprep.subr.bf16.mxu0 0
    %406 = vmatpush1.bf16.msra.mxu0 %v324
    %407 = vmatprep.subr.bf16.mxu0 0
    %408 = vmatpush1.bf16.msra.mxu0 %v325
    %409 = vmatprep.subr.bf16.mxu0 0
    %410 = vmatpush1.bf16.msra.mxu0 %v326
    %411 = vmatprep.subr.bf16.mxu0 0
    %412 = vmatpush1.bf16.msra.mxu0 %v327
    %413 = vmatprep.subr.bf16.mxu0 0
    %414 = vmatpush1.bf16.msra.mxu0 %v328
    %415 = vmatprep.subr.bf16.mxu0 0
    %416 = vmatpush1.bf16.msra.mxu0 %v329
    %417 = vmatprep.subr.bf16.mxu0 0
    %418 = vmatpush1.bf16.msra.mxu0 %v330
    %419 = vmatprep.subr.bf16.mxu0 0
    %420 = vmatpush1.bf16.msra.mxu0 %v331
    %421 = vmatprep.subr.bf16.mxu0 0
    %422 = vmatpush1.bf16.msra.mxu0 0
    %423 = vmatprep.subr.bf16.mxu0 0
    %424 = vmatpush1.bf16.msra.mxu0 0
    %425 = vmatprep.subr.bf16.mxu0 0
    %426 = vmatpush1.bf16.msra.mxu0 0
    %427 = vmatprep.subr.bf16.mxu0 0
    %428 = vmatpush1.bf16.msra.mxu0 0
    %429 = vmatprep.subr.bf16.mxu0 0
    %430 = vmatpush1.bf16.msra.mxu0 0
    %431 = vmatprep.subr.bf16.mxu0 0
    %432 = vmatpush1.bf16.msra.mxu0 0
    %433 = vmatprep.subr.bf16.mxu0 0
    %434 = vmatpush1.bf16.msra.mxu0 0
    %435 = vmatprep.subr.bf16.mxu0 0
    %436 = vmatpush1.bf16.msra.mxu0 0
    %437 = vmatprep.mubr.bf16.mxu0 0
    %438 = vmatmul.mubr.bf16.gmra.mrb[0].mxu0 %v156
    %v439 = vpop.f32.mrb[0].mxu0
    %v440 = vadd.f32 %v391, %v439
    %v441 = vpop.f32.mrb[0].mxu0
    %v442 = vpop.f32.mrb[0].mxu0
    %v443 = vadd.f32 %v394, %v442
    %v444 = vpop.f32.mrb[0].mxu0
    %445 = vmatprep.mubr.bf16.mxu0 0
    %446 = vmatmul.mubr.bf16.gmra.mrb[0].mxu0 %v159
    %v447 = vpop.f32.mrb[0].mxu0
    %v448 = vadd.f32 %v399, %v447
    %v449 = vpop.f32.mrb[0].mxu0
    %v450 = vpop.f32.mrb[0].mxu0
    %v451 = vadd.f32 %v402, %v450
    %v452 = vpop.f32.mrb[0].mxu0
    %453 = vdwg.mxu0
    %v454 = vmax.f32 %v440, 0.0
    %v455 = vmax.f32 %v443, 0.0
    %v456 = vmax.f32 %v448, 0.0
    %v457 = vmax.f32 %v451, 0.0
    %v462 = vrot.slane %v454, 7
    %v463 = vrot.slane %v455, 7
    %v464 = vsel %vm120, %v462, %v463
    %v465 = vrot.slane %v456, 7
    %v466 = vsel %vm120, %v463, %v465
    %v467 = vrot.slane %v457, 7
    %v468 = vsel %vm120, %v465, %v467
    %v473 = vsel %vm120, 0.0, %v462
    %v474 = vsel %vm108, %v473, 0.0
    %v475 = vsel %vm109, %v464, 0.0
    %v476 = vsel %vm110, %v466, 0.0
    %v477 = vsel %vm111, %v468, 0.0
    %v478 = vrot.slane %v454, 1
    %v479 = vrot.slane %v455, 1
    %v480 = vsel %vm137, %v478, %v479
    %v481 = vrot.slane %v456, 1
    %v482 = vsel %vm137, %v479, %v481
    %v483 = vrot.slane %v457, 1
    %v484 = vsel %vm137, %v481, %v483
    %v489 = vsel %vm137, %v483, 0.0
    %v490 = vsel %vm112, %v480, 0.0
    %v491 = vsel %vm113, %v482, 0.0
    %v492 = vsel %vm114, %v484, 0.0
    %v493 = vsel %vm115, %v489, 0.0
    %v494 = vpack.c.bf16 %v475, %v474
    %v495 = vpack.c.bf16 %v455, %v454
    %v496 = vpack.c.bf16 %v491, %v490
    %v497 = vpack.c.bf16 %v477, %v476
    %v498 = vpack.c.bf16 %v457, %v456
    %v499 = vpack.c.bf16 %v493, %v492
    %v500 = vld [vmem:[#allocation8] sm:$0xf]
    %v501 = vld [vmem:[#allocation8 + $0x4] sm:$0xf]
    %v502 = vld [vmem:[#allocation8 + $0x8] sm:$0xf]
    %v503 = vld [vmem:[#allocation8 + $0xc] sm:$0xf]
    %v504 = vld [vmem:[#allocation8 + $0x10] sm:$0xf]
    %v505 = vld [vmem:[#allocation8 + $0x14] sm:$0xf]
    %v506 = vld [vmem:[#allocation8 + $0x18] sm:$0xf]
    %v507 = vld [vmem:[#allocation8 + $0x1c] sm:$0xf]
    %v508 = vld [vmem:[#allocation8 + $0x20] sm:$0xf]
    %v509 = vld [vmem:[#allocation8 + $0x24] sm:$0xf]
    %v510 = vld [vmem:[#allocation8 + $0x28] sm:$0xf]
    %v511 = vld [vmem:[#allocation8 + $0x2c] sm:$0xf]
    %v512 = vld [vmem:[#allocation8 + $0x30] sm:$0xf]
    %v513 = vld [vmem:[#allocation8 + $0x34] sm:$0xf]
    %v514 = vld [vmem:[#allocation8 + $0x38] sm:$0xf]
    %v515 = vld [vmem:[#allocation8 + $0x3c] sm:$0xf]
    %v516 = vld [vmem:[#allocation8 + $0x40] sm:$0xf]
    %v517 = vld [vmem:[#allocation8 + $0x44] sm:$0xf]
    %v518 = vld [vmem:[#allocation8 + $0x48] sm:$0xf]
    %v519 = vld [vmem:[#allocation8 + $0x4c] sm:$0xf]
    %v520 = vld [vmem:[#allocation8 + $0x50] sm:$0xf]
    %v521 = vld [vmem:[#allocation8 + $0x54] sm:$0xf]
    %v522 = vld [vmem:[#allocation8 + $0x58] sm:$0xf]
    %v523 = vld [vmem:[#allocation8 + $0x5c] sm:$0xf]
    %v524 = vld [vmem:[#allocation8 + $0x60] sm:$0xf]
    %v525 = vld [vmem:[#allocation8 + $0x64] sm:$0xf]
    %v526 = vld [vmem:[#allocation8 + $0x68] sm:$0xf]
    %v527 = vld [vmem:[#allocation8 + $0x6c] sm:$0xf]
    %v528 = vld [vmem:[#allocation8 + $0x70] sm:$0xf]
    %v529 = vld [vmem:[#allocation8 + $0x74] sm:$0xf]
    %v530 = vld [vmem:[#allocation8 + $0x78] sm:$0xf]
    %v531 = vld [vmem:[#allocation8 + $0x7c] sm:$0xf]
    %v532 = vld [vmem:[#allocation8 + $0x80] sm:$0xf]
    %v533 = vld [vmem:[#allocation8 + $0x84] sm:$0xf]
    %v534 = vld [vmem:[#allocation8 + $0x88] sm:$0xf]
    %v535 = vld [vmem:[#allocation8 + $0x8c] sm:$0xf]
    %v536 = vld [vmem:[#allocation8 + $0x90] sm:$0xf]
    %v537 = vld [vmem:[#allocation8 + $0x94] sm:$0xf]
    %v538 = vld [vmem:[#allocation8 + $0x98] sm:$0xf]
    %v539 = vld [vmem:[#allocation8 + $0x9c] sm:$0xf]
    %v540 = vld [vmem:[#allocation8 + $0xa0] sm:$0xf]
    %v541 = vld [vmem:[#allocation8 + $0xa4] sm:$0xf]
    %v542 = vld [vmem:[#allocation8 + $0xa8] sm:$0xf]
    %v543 = vld [vmem:[#allocation8 + $0xac] sm:$0xf]
    %v544 = vld [vmem:[#allocation8 + $0xb0] sm:$0xf]
    %v545 = vld [vmem:[#allocation8 + $0xb4] sm:$0xf]
    %v546 = vld [vmem:[#allocation8 + $0xb8] sm:$0xf]
    %v547 = vld [vmem:[#allocation8 + $0xbc] sm:$0xf]
    %v596 = vunpack.c.l.b16 %v500
    %v597 = vunpack.c.l.b16 %v501
    %v598 = vunpack.c.l.b16 %v502
    %v599 = vunpack.c.l.b16 %v503
    %v600 = vunpack.c.l.b16 %v504
    %v601 = vunpack.c.l.b16 %v505
    %v602 = vunpack.c.l.b16 %v506
    %v603 = vunpack.c.l.b16 %v507
    %v604 = vunpack.c.l.b16 %v508
    %v605 = vunpack.c.l.b16 %v509
    %v606 = vunpack.c.l.b16 %v510
    %v607 = vunpack.c.l.b16 %v511
    %v608 = vunpack.c.l.b16 %v512
    %v609 = vunpack.c.l.b16 %v513
    %v610 = vunpack.c.l.b16 %v514
    %v611 = vunpack.c.l.b16 %v515
    %v612 = vunpack.c.l.b16 %v516
    %v613 = vunpack.c.l.b16 %v517
    %v614 = vunpack.c.l.b16 %v518
    %v615 = vunpack.c.l.b16 %v519
    %v616 = vunpack.c.l.b16 %v520
    %v617 = vunpack.c.l.b16 %v521
    %v618 = vunpack.c.l.b16 %v522
    %v619 = vunpack.c.l.b16 %v523
    %v620 = vunpack.c.l.b16 %v524
    %v621 = vunpack.c.l.b16 %v525
    %v622 = vunpack.c.l.b16 %v526
    %v623 = vunpack.c.l.b16 %v527
    %v624 = vunpack.c.l.b16 %v528
    %v625 = vunpack.c.l.b16 %v529
    %v626 = vunpack.c.l.b16 %v530
    %v627 = vunpack.c.l.b16 %v531
    %v628 = vunpack.c.l.b16 %v532
    %v629 = vunpack.c.l.b16 %v533
    %v630 = vunpack.c.l.b16 %v534
    %v631 = vunpack.c.l.b16 %v535
    %v632 = vunpack.c.l.b16 %v536
    %v633 = vunpack.c.l.b16 %v537
    %v634 = vunpack.c.l.b16 %v538
    %v635 = vunpack.c.l.b16 %v539
    %v636 = vunpack.c.l.b16 %v540
    %v637 = vunpack.c.l.b16 %v541
    %v638 = vunpack.c.l.b16 %v542
    %v639 = vunpack.c.l.b16 %v543
    %v640 = vunpack.c.l.b16 %v544
    %v641 = vunpack.c.l.b16 %v545
    %v642 = vunpack.c.l.b16 %v546
    %v643 = vunpack.c.l.b16 %v547
    %v644 = vpack.c.b16 %v597, %v596
    %v645 = vpack.c.b16 %v599, %v598
    %v646 = vpack.c.b16 %v601, %v600
    %v647 = vpack.c.b16 %v603, %v602
    %v648 = vpack.c.b16 %v605, %v604
    %v649 = vpack.c.b16 %v607, %v606
    %v650 = vpack.c.b16 %v609, %v608
    %v651 = vpack.c.b16 %v611, %v610
    %v652 = vpack.c.b16 %v613, %v612
    %v653 = vpack.c.b16 %v615, %v614
    %v654 = vpack.c.b16 %v617, %v616
    %v655 = vpack.c.b16 %v619, %v618
    %v656 = vpack.c.b16 %v621, %v620
    %v657 = vpack.c.b16 %v623, %v622
    %v658 = vpack.c.b16 %v625, %v624
    %v659 = vpack.c.b16 %v627, %v626
    %v660 = vpack.c.b16 %v629, %v628
    %v661 = vpack.c.b16 %v631, %v630
    %v662 = vpack.c.b16 %v633, %v632
    %v663 = vpack.c.b16 %v635, %v634
    %v664 = vpack.c.b16 %v637, %v636
    %v665 = vpack.c.b16 %v639, %v638
    %v666 = vpack.c.b16 %v641, %v640
    %v667 = vpack.c.b16 %v643, %v642
    %692 = vmatprep.subr.bf16.mxu0 0
    %693 = vmatpush1.bf16.msra.mxu0 %v644
    %694 = vmatprep.subr.bf16.mxu0 0
    %695 = vmatpush1.bf16.msra.mxu0 %v645
    %696 = vmatprep.subr.bf16.mxu0 0
    %697 = vmatpush1.bf16.msra.mxu0 %v646
    %698 = vmatprep.subr.bf16.mxu0 0
    %699 = vmatpush1.bf16.msra.mxu0 %v647
    %700 = vmatprep.subr.bf16.mxu0 0
    %701 = vmatpush1.bf16.msra.mxu0 %v648
    %702 = vmatprep.subr.bf16.mxu0 0
    %703 = vmatpush1.bf16.msra.mxu0 %v649
    %704 = vmatprep.subr.bf16.mxu0 0
    %705 = vmatpush1.bf16.msra.mxu0 %v650
    %706 = vmatprep.subr.bf16.mxu0 0
    %707 = vmatpush1.bf16.msra.mxu0 %v651
    %708 = vmatprep.subr.bf16.mxu0 0
    %709 = vmatpush1.bf16.msra.mxu0 %v652
    %710 = vmatprep.subr.bf16.mxu0 0
    %711 = vmatpush1.bf16.msra.mxu0 %v653
    %712 = vmatprep.subr.bf16.mxu0 0
    %713 = vmatpush1.bf16.msra.mxu0 %v654
    %714 = vmatprep.subr.bf16.mxu0 0
    %715 = vmatpush1.bf16.msra.mxu0 %v655
    %716 = vmatprep.subr.bf16.mxu0 0
    %717 = vmatpush1.bf16.msra.mxu0 %v656
    %718 = vmatprep.subr.bf16.mxu0 0
    %719 = vmatpush1.bf16.msra.mxu0 %v657
    %720 = vmatprep.subr.bf16.mxu0 0
    %721 = vmatpush1.bf16.msra.mxu0 %v658
    %722 = vmatprep.subr.bf16.mxu0 0
    %723 = vmatpush1.bf16.msra.mxu0 %v659
    %724 = vmatprep.mubr.bf16.mxu0 %v495
    %725 = vmatmul.mubr.bf16.gmra.mrb[0].mxu0 %v494
    %v726 = vpop.f32.mrb[0].mxu0
    %v727 = vadd.f32 %v95, %v726
    %v728 = vpop.f32.mrb[0].mxu0
    %v729 = vpop.f32.mrb[0].mxu0
    %v730 = vadd.f32 %v96, %v729
    %v731 = vpop.f32.mrb[0].mxu0
    %732 = vmatprep.mubr.bf16.mxu0 %v498
    %733 = vmatmul.mubr.bf16.gmra.mrb[0].mxu0 %v497
    %v734 = vpop.f32.mrb[0].mxu0
    %v735 = vadd.f32 %v97, %v734
    %v736 = vpop.f32.mrb[0].mxu0
    %v737 = vpop.f32.mrb[0].mxu0
    %v738 = vadd.f32 %v98, %v737
    %v739 = vpop.f32.mrb[0].mxu0
    %740 = vdwg.mxu0
    %741 = vmatprep.subr.bf16.mxu0 0
    %742 = vmatpush1.bf16.msra.mxu0 %v660
    %743 = vmatprep.subr.bf16.mxu0 0
    %744 = vmatpush1.bf16.msra.mxu0 %v661
    %745 = vmatprep.subr.bf16.mxu0 0
    %746 = vmatpush1.bf16.msra.mxu0 %v662
    %747 = vmatprep.subr.bf16.mxu0 0
    %748 = vmatpush1.bf16.msra.mxu0 %v663
    %749 = vmatprep.subr.bf16.mxu0 0
    %750 = vmatpush1.bf16.msra.mxu0 %v664
    %751 = vmatprep.subr.bf16.mxu0 0
    %752 = vmatpush1.bf16.msra.mxu0 %v665
    %753 = vmatprep.subr.bf16.mxu0 0
    %754 = vmatpush1.bf16.msra.mxu0 %v666
    %755 = vmatprep.subr.bf16.mxu0 0
    %756 = vmatpush1.bf16.msra.mxu0 %v667
    %757 = vmatprep.subr.bf16.mxu0 0
    %758 = vmatpush1.bf16.msra.mxu0 0
    %759 = vmatprep.subr.bf16.mxu0 0
    %760 = vmatpush1.bf16.msra.mxu0 0
    %761 = vmatprep.subr.bf16.mxu0 0
    %762 = vmatpush1.bf16.msra.mxu0 0
    %763 = vmatprep.subr.bf16.mxu0 0
    %764 = vmatpush1.bf16.msra.mxu0 0
    %765 = vmatprep.subr.bf16.mxu0 0
    %766 = vmatpush1.bf16.msra.mxu0 0
    %767 = vmatprep.subr.bf16.mxu0 0
    %768 = vmatpush1.bf16.msra.mxu0 0
    %769 = vmatprep.subr.bf16.mxu0 0
    %770 = vmatpush1.bf16.msra.mxu0 0
    %771 = vmatprep.subr.bf16.mxu0 0
    %772 = vmatpush1.bf16.msra.mxu0 0
    %773 = vmatprep.mubr.bf16.mxu0 0
    %774 = vmatmul.mubr.bf16.gmra.mrb[0].mxu0 %v496
    %v775 = vpop.f32.mrb[0].mxu0
    %v776 = vadd.f32 %v727, %v775
    %v777 = vpop.f32.mrb[0].mxu0
    %v778 = vpop.f32.mrb[0].mxu0
    %v779 = vadd.f32 %v730, %v778
    %v780 = vpop.f32.mrb[0].mxu0
    %781 = vmatprep.mubr.bf16.mxu0 0
    %782 = vmatmul.mubr.bf16.gmra.mrb[0].mxu0 %v499
    %v783 = vpop.f32.mrb[0].mxu0
    %v784 = vadd.f32 %v735, %v783
    %v785 = vpop.f32.mrb[0].mxu0
    %v786 = vpop.f32.mrb[0].mxu0
    %v787 = vadd.f32 %v738, %v786
    %v788 = vpop.f32.mrb[0].mxu0
    %789 = vdwg.mxu0
    %790 = vst [vmem:[#allocation10] sm:$0xff] %v776
    %791 = vst [vmem:[#allocation10 + $0x8] sm:$0xff] %v779
    %792 = vst [vmem:[#allocation10 + $0x10] sm:$0xff] %v784
    %793 = vst [vmem:[#allocation10 + $0x18] sm:$0xff] %v787
    // Predicated region
    $region34: #{tpu_custom_call.1} parent=1 // pred_check
      _
    $region35: #{tpu_custom_call.1} parent=1 // pred_check_branch
      %795 = sbr.rel (0) target = $region37
    $region36: #{tpu_custom_call.1} parent=1 // pred_region
      %s797 = ssub.s32 512, 512
      %798 = vsyncadd [#allocation4], %s797
      %s799 = sshll.u32 [#allocation10], 4
      %s800 = int_to_ptr.vmem [resolvable:$true] %s799
      %805 = dma.vmem_to_hbm [thread:$0]  %s800, 512, %s4, [#allocation4], 128, 128, 8
    $region37: #{tpu_custom_call.1} parent=1 // pred_fallthru
      _
    // Predicated region
    $region38: #{tpu_custom_call.1} parent=1 // pred_check
      _
    $region39: #{tpu_custom_call.1} parent=1 // pred_check_branch
      %807 = sbr.rel (0) target = $region41
    $region40: #{tpu_custom_call.1} parent=1 // pred_region
      %808 = dma.done [#allocation4], 512
    $region41: #{tpu_custom_call.1} parent=1 // pred_fallthru
      _
    %809 = vsyncpa [#allocation3], 1
    %810 = vsyncpa [#allocation6], 1
    %811 = vsyncpa [#allocation9], 1
    %812 = vsyncpa [#allocation4], 1

</llo_original>
